<compile_context>
chip_gen: v5e
topology: v5e:2x2
jax: 0.10.0
libtpu: 0.0.40
codegen_flags: <defaults>
</compile_context>

<pallas_src>
import functools

import jax
import jax.numpy as jnp
from jax.experimental import pallas as pl
from jax.experimental.pallas import tpu as pltpu


def _round_up(x, m):
    return (x + m - 1) // m * m


# ----------------------------------------------------------------------------
# Kernel: fused encoder+decoder for one (view, batch-tile) grid cell.
# Four bf16 MXU matmuls with f32 accumulation; bias-add/ReLU in f32.
# ----------------------------------------------------------------------------
def _fused_view_kernel(x_ref, w1_ref, b1_ref, w2_ref, b2_ref,
                       w3_ref, b3_ref, w4_ref, b4_ref,
                       z_ref, rec_ref):
    """z = relu(relu(x@W1+b1)@W2+b2);  rec = relu(relu(z@W3+b3)@W4+b4)."""
    x = x_ref[0]                                                  # bf16 (TB, IN_P)

    h = jnp.dot(x, w1_ref[0], preferred_element_type=jnp.float32)
    h = jnp.maximum(h + b1_ref[0], 0.0)                           # f32 (TB, HID_P)

    z = jnp.dot(h.astype(jnp.bfloat16), w2_ref[0],
                preferred_element_type=jnp.float32)
    z = jnp.maximum(z + b2_ref[0], 0.0)                           # f32 (TB, OUT_P)
    z_ref[0] = z

    h2 = jnp.dot(z.astype(jnp.bfloat16), w3_ref[0],
                 preferred_element_type=jnp.float32)
    h2 = jnp.maximum(h2 + b3_ref[0], 0.0)                         # f32 (TB, HID_P)

    rec = jnp.dot(h2.astype(jnp.bfloat16), w4_ref[0],
                  preferred_element_type=jnp.float32)
    rec_ref[0] = jnp.maximum(rec + b4_ref[0], 0.0)                # f32 (TB, IN_P)


# ----------------------------------------------------------------------------
# Per-generation VMEM budgeting and batch-tile selection (trace-time Python).
# ----------------------------------------------------------------------------
def _vmem_budget_bytes():
    cap = 128 * 1024 * 1024                      # v5e/v6e physical
    try:
        cap = int(pltpu.get_tpu_info().vmem_capacity_bytes)   # 64 MiB on v7x
    except Exception:
        pass
    # 3/4 of physical, capped at 96 MiB: ~48 MiB on v7x, 96 MiB on v5e/v6e.
    return min((cap * 3) // 4, 96 * 1024 * 1024)


def _max_tb_for_budget(in_p, hid_p, out_p, budget):
    """Largest batch tile (multiple of 8) whose working set fits `budget`."""
    # Weights (bf16; assume 2 buffers in case Buffered(1) is unavailable).
    w_bytes = 2 * 2 * (in_p * hid_p + hid_p * out_p + out_p * hid_p + hid_p * in_p)
    b_bytes = 2 * 4 * (2 * hid_p + out_p + in_p)          # f32 biases, 2 bufs
    # Per-row: double-buffered x (bf16) + z/rec outputs (f32) + in-kernel
    # temporaries (h, h2, bf16 casts of h/z/h2) with slack.
    per_row = (2 * 2 * in_p + 2 * 4 * out_p + 2 * 4 * in_p
               + 4 * (2 * hid_p + out_p) + 2 * (2 * hid_p + out_p))
    avail = budget - w_bytes - b_bytes - (2 << 20)        # 2 MiB slack
    if avail <= 8 * per_row:
        return 8
    return max(8, min(2048, (avail // per_row) // 8 * 8))


def _pick_tb(pb8, cap):
    """Pick the batch tile: whole batch if it fits, else minimize last-tile waste."""
    if pb8 <= cap:
        return pb8                                        # single tile, zero padding
    best_tb, best_key = 8, None
    for tb in (cap, 1024, 768, 512, 384, 256, 128, 64, 32, 16, 8):
        if tb > cap or tb < 8 or tb % 8:
            continue
        waste = (-pb8) % tb
        if waste * 16 <= pb8:                             # <=~6% padded rows
            return tb                                     # take the largest such tile
        key = (waste, -tb)
        if best_key is None or key < best_key:
            best_key, best_tb = key, tb
    return best_tb


def _pinned_spec(shape, index_map):
    """Weight/bias spec pinned across batch tiles; single-buffered when supported."""
    try:
        return pl.BlockSpec(shape, index_map, pipeline_mode=pl.Buffered(1))
    except TypeError:
        return pl.BlockSpec(shape, index_map)


# ----------------------------------------------------------------------------
# pallas_call wrapper.
# ----------------------------------------------------------------------------
def _fused_forward(x_pad, packed, *, tb):
    """x_pad: (3, PB, IN_P) bf16, PB % tb == 0; packed: stacked/padded params."""
    w1, b1, w2, b2, w3, b3, w4, b4 = packed
    nviews, pb, in_p = x_pad.shape
    hid_p = w1.shape[2]
    out_p = w2.shape[2]
    nb = pb // tb

    x_map = lambda v, b: (v, b, 0)      # per-view, per-batch-tile
    w_map = lambda v, b: (v, 0, 0)      # per-view, pinned across batch tiles

    flops = 2 * nviews * pb * (in_p * hid_p + hid_p * out_p
                               + out_p * hid_p + hid_p * in_p)
    bytes_accessed = (x_pad.size * x_pad.dtype.itemsize
                      + sum(p.size * p.dtype.itemsize for p in packed)
                      + nviews * pb * (out_p + in_p) * 4)

    return pl.pallas_call(
        _fused_view_kernel,
        out_shape=(
            jax.ShapeDtypeStruct((nviews, pb, out_p), jnp.float32),  # z
            jax.ShapeDtypeStruct((nviews, pb, in_p), jnp.float32),   # rec
        ),
        grid=(nviews, nb),
        in_specs=[
            pl.BlockSpec((1, tb, in_p), x_map),          # x (bf16)
            _pinned_spec((1, in_p, hid_p), w_map),       # W1 (bf16)
            _pinned_spec((1, 1, hid_p), w_map),          # b1 (f32)
            _pinned_spec((1, hid_p, out_p), w_map),      # W2 (bf16)
            _pinned_spec((1, 1, out_p), w_map),          # b2 (f32)
            _pinned_spec((1, out_p, hid_p), w_map),      # W3 (bf16)
            _pinned_spec((1, 1, hid_p), w_map),          # b3 (f32)
            _pinned_spec((1, hid_p, in_p), w_map),       # W4 (bf16)
            _pinned_spec((1, 1, in_p), w_map),           # b4 (f32)
        ],
        out_specs=(
            pl.BlockSpec((1, tb, out_p), x_map),         # z
            pl.BlockSpec((1, tb, in_p), x_map),          # rec
        ),
        compiler_params=pltpu.CompilerParams(
            # Batch axis (innermost) is the megacore-sharded one on v7x; the
            # size-3 view axis stays serial so both cores get balanced work and
            # weights remain resident across a view's batch tiles.
            dimension_semantics=("arbitrary", "parallel"),
            vmem_limit_bytes=_vmem_budget_bytes(),
        ),
        cost_estimate=pl.CostEstimate(flops=flops, transcendentals=0,
                                      bytes_accessed=bytes_accessed),
    )(x_pad, w1, b1, w2, b2, w3, b3, w4, b4)


# ----------------------------------------------------------------------------
# Parameter init (PyTorch nn.Linear style) and packing (stack views + pad).
# ----------------------------------------------------------------------------
def _init_linear(key, in_dim, out_dim):
    kw, kb = jax.random.split(key)
    bound = 1.0 / jnp.sqrt(jnp.float32(in_dim))
    w = jax.random.uniform(kw, (in_dim, out_dim), jnp.float32, -bound, bound)
    b = jax.random.uniform(kb, (1, out_dim), jnp.float32, -bound, bound)
    return w, b


def init_params(key, input_dim, output_dim, hidden_dim):
    params = {}
    dims = {
        "encoder_A": (input_dim, hidden_dim, output_dim),
        "encoder_B": (input_dim, hidden_dim, output_dim),
        "encoder_C": (input_dim, hidden_dim, output_dim),
        "decoder_A": (output_dim, hidden_dim, input_dim),
        "decoder_B": (output_dim, hidden_dim, input_dim),
        "decoder_C": (output_dim, hidden_dim, input_dim),
    }
    names = list(dims)
    keys = jax.random.split(key, 2 * len(names))
    for i, name in enumerate(names):
        d_in, d_hid, d_out = dims[name]
        w1, b1 = _init_linear(keys[2 * i], d_in, d_hid)
        w2, b2 = _init_linear(keys[2 * i + 1], d_hid, d_out)
        params[name] = (w1, b1, w2, b2)
    return params


def pack_params(params, input_dim, output_dim, hidden_dim):
    """Stack the 3 views, zero-pad feature dims to x128, weights -> bf16."""
    in_p = _round_up(input_dim, 128)
    hid_p = _round_up(hidden_dim, 128)
    out_p = _round_up(output_dim, 128)

    def pad2(a, r, c):
        return jnp.pad(a, ((0, r - a.shape[0]), (0, c - a.shape[1])))

    def stack(role, idx, r, c, dtype):
        return jnp.stack(
            [pad2(params[f"{role}_{v}"][idx], r, c) for v in "ABC"]).astype(dtype)

    w1 = stack("encoder", 0, in_p, hid_p, jnp.bfloat16)   # (3, IN_P, HID_P)
    b1 = stack("encoder", 1, 1, hid_p, jnp.float32)       # (3, 1, HID_P)
    w2 = stack("encoder", 2, hid_p, out_p, jnp.bfloat16)  # (3, HID_P, OUT_P)
    b2 = stack("encoder", 3, 1, out_p, jnp.float32)       # (3, 1, OUT_P)
    w3 = stack("decoder", 0, out_p, hid_p, jnp.bfloat16)  # (3, OUT_P, HID_P)
    b3 = stack("decoder", 1, 1, hid_p, jnp.float32)       # (3, 1, HID_P)
    w4 = stack("decoder", 2, hid_p, in_p, jnp.bfloat16)   # (3, HID_P, IN_P)
    b4 = stack("decoder", 3, 1, in_p, jnp.float32)        # (3, 1, IN_P)
    return (w1, b1, w2, b2, w3, b3, w4, b4)


# ----------------------------------------------------------------------------
# Forward.
# ----------------------------------------------------------------------------
def multi_view_contrastive_forward_padded(packed, x_pad):
    """Fast path for callers that keep data stacked & feature-padded.

    x_pad: (3, PB, IN_P) bf16 with PB a multiple of 8 and IN_P = round_up(in,128).
    Returns padded (z_all, rec_all) f32 of shape (3, PB, OUT_P) / (3, PB, IN_P);
    slice lazily at the consumer.
    """
    nviews, pb, in_p = x_pad.shape
    hid_p = packed[0].shape[2]
    out_p = packed[2].shape[2]

    cap = _max_tb_for_budget(in_p, hid_p, out_p, _vmem_budget_bytes())
    tb = _pick_tb(pb, cap)
    pb_full = _round_up(pb, tb)
    if pb_full != pb:
        x_pad = jnp.pad(x_pad, ((0, 0), (0, pb_full - pb), (0, 0)))

    z_all, rec_all = _fused_forward(x_pad, packed, tb=tb)
    if pb_full != pb:
        z_all = z_all[:, :pb]
        rec_all = rec_all[:, :pb]
    return z_all, rec_all


@functools.partial(jax.jit, static_argnames=("output_dim",))
def multi_view_contrastive_forward(packed, A, B, C, *, output_dim):
    """Mirrors MultiViewContrastiveModel.forward(A, B, C)."""
    batch, input_dim = A.shape
    in_p = packed[0].shape[1]    # W1: (3, IN_P, HID_P)
    pb8 = _round_up(batch, 8)

    x = jnp.stack([A, B, C], axis=0).astype(jnp.bfloat16)           # (3, B, IN)
    if pb8 != batch or in_p != input_dim:
        x = jnp.pad(x, ((0, 0), (0, pb8 - batch), (0, in_p - input_dim)))

    z_all, rec_all = multi_view_contrastive_forward_padded(packed, x)

    if z_all.shape[1] != batch or z_all.shape[2] != output_dim:
        z_all = z_all[:, :batch, :output_dim]
    if rec_all.shape[1] != batch or rec_all.shape[2] != input_dim:
        rec_all = rec_all[:, :batch, :input_dim]
    return (z_all[0], z_all[1], z_all[2], rec_all[0], rec_all[1], rec_all[2])


# ----------------------------------------------------------------------------
if __name__ == "__main__":
    # Small synthetic shapes consistent with the module's forward.
    batch = 8
    input_dim = 32
    hidden_dim = 64
    output_dim = 16

    key = jax.random.PRNGKey(0)
    k_params, kA, kB, kC = jax.random.split(key, 4)

    params = init_params(k_params, input_dim, output_dim, hidden_dim)
    packed = pack_params(params, input_dim, output_dim, hidden_dim)

    A = jax.random.normal(kA, (batch, input_dim), jnp.float32)
    B = jax.random.normal(kB, (batch, input_dim), jnp.float32)
    C = jax.random.normal(kC, (batch, input_dim), jnp.float32)

    outs = multi_view_contrastive_forward(packed, A, B, C, output_dim=output_dim)
    outs = jax.block_until_ready(outs)

    # Pure-JAX f32 reference (unpadded, per-view params).  The kernel runs its
    # matmuls in bf16 (f32 accumulation), so tolerances are loosened.
    def ref_mlp2(x, w1, b1, w2, b2):
        h = jnp.maximum(x @ w1 + b1, 0.0)
        return jnp.maximum(h @ w2 + b2, 0.0)

    z_A_ref = ref_mlp2(A, *params["encoder_A"])
    z_B_ref = ref_mlp2(B, *params["encoder_B"])
    z_C_ref = ref_mlp2(C, *params["encoder_C"])
    refs = (z_A_ref, z_B_ref, z_C_ref,
            ref_mlp2(z_A_ref, *params["decoder_A"]),
            ref_mlp2(z_B_ref, *params["decoder_B"]),
            ref_mlp2(z_C_ref, *params["decoder_C"]))

    for o, r in zip(outs, refs):
        assert o.shape == r.shape, (o.shape, r.shape)
        assert jnp.allclose(o, r, atol=5e-2, rtol=5e-2), \
            float(jnp.max(jnp.abs(o - r)))

    print("KERNEL_OK")
</pallas_src>

<mosaic_0001>
module attributes {stable_mosaic.version = 11 : i64} {
  func.func @_fused_view_kernel(%arg0: i32, %arg1: i32, %arg2: memref<1x8x128xbf16, #tpu.memory_space<vmem>>, %arg3: memref<1x128x128xbf16, #tpu.memory_space<vmem>>, %arg4: memref<1x1x128xf32, #tpu.memory_space<vmem>>, %arg5: memref<1x128x128xbf16, #tpu.memory_space<vmem>>, %arg6: memref<1x1x128xf32, #tpu.memory_space<vmem>>, %arg7: memref<1x128x128xbf16, #tpu.memory_space<vmem>>, %arg8: memref<1x1x128xf32, #tpu.memory_space<vmem>>, %arg9: memref<1x128x128xbf16, #tpu.memory_space<vmem>>, %arg10: memref<1x1x128xf32, #tpu.memory_space<vmem>>, %arg11: memref<1x8x128xf32, #tpu.memory_space<vmem>>, %arg12: memref<1x8x128xf32, #tpu.memory_space<vmem>>) attributes {dimension_semantics = [#tpu.dimension_semantics<arbitrary>, #tpu.dimension_semantics<parallel>], iteration_bounds = array<i64: 3, 1>, scalar_prefetch = 0 : i64, scratch_operands = 0 : i64, tpu.core_type = #tpu.core_type<tc>, window_params = [{transform_indices = @transform_0, window_bounds = array<i64: 1, 8, 128>}, {pipeline_mode = #tpu.pipeline_mode<synchronous>, transform_indices = @transform_1, window_bounds = array<i64: 1, 128, 128>}, {pipeline_mode = #tpu.pipeline_mode<synchronous>, transform_indices = @transform_2, window_bounds = array<i64: 1, 1, 128>}, {pipeline_mode = #tpu.pipeline_mode<synchronous>, transform_indices = @transform_3, window_bounds = array<i64: 1, 128, 128>}, {pipeline_mode = #tpu.pipeline_mode<synchronous>, transform_indices = @transform_4, window_bounds = array<i64: 1, 1, 128>}, {pipeline_mode = #tpu.pipeline_mode<synchronous>, transform_indices = @transform_5, window_bounds = array<i64: 1, 128, 128>}, {pipeline_mode = #tpu.pipeline_mode<synchronous>, transform_indices = @transform_6, window_bounds = array<i64: 1, 1, 128>}, {pipeline_mode = #tpu.pipeline_mode<synchronous>, transform_indices = @transform_7, window_bounds = array<i64: 1, 128, 128>}, {pipeline_mode = #tpu.pipeline_mode<synchronous>, transform_indices = @transform_8, window_bounds = array<i64: 1, 1, 128>}, {transform_indices = @transform_9, window_bounds = array<i64: 1, 8, 128>}, {transform_indices = @transform_10, window_bounds = array<i64: 1, 8, 128>}]} {
    %c0 = arith.constant 0 : index
    %c0_0 = arith.constant 0 : index
    %c0_1 = arith.constant 0 : index
    %0 = vector.load %arg2[%c0, %c0_0, %c0_1] : memref<1x8x128xbf16, #tpu.memory_space<vmem>>, vector<1x8x128xbf16>
    %1 = vector.shape_cast %0 : vector<1x8x128xbf16> to vector<8x128xbf16>
    %c0_2 = arith.constant 0 : index
    %c0_3 = arith.constant 0 : index
    %c0_4 = arith.constant 0 : index
    %2 = vector.load %arg3[%c0_2, %c0_3, %c0_4] : memref<1x128x128xbf16, #tpu.memory_space<vmem>>, vector<1x128x128xbf16>
    %3 = vector.shape_cast %2 : vector<1x128x128xbf16> to vector<128x128xbf16>
    %cst = arith.constant dense<0.000000e+00> : vector<8x128xf32>
    %4 = tpu.matmul %1, %3, %cst {dimension_numbers = #tpu.dot_dimension_numbers<[1], [0], [0], [1], [0, 0, 1, 1], [], []>} : vector<8x128xbf16>, vector<128x128xbf16>, vector<8x128xf32> -> vector<8x128xf32>
    %c0_5 = arith.constant 0 : index
    %c0_6 = arith.constant 0 : index
    %c0_7 = arith.constant 0 : index
    %5 = vector.load %arg4[%c0_5, %c0_6, %c0_7] : memref<1x1x128xf32, #tpu.memory_space<vmem>>, vector<1x1x128xf32>
    %6 = vector.shape_cast %5 : vector<1x1x128xf32> to vector<1x128xf32>
    %7 = vector.broadcast %6 : vector<1x128xf32> to vector<8x128xf32>
    %8 = arith.addf %4, %7 : vector<8x128xf32>
    %cst_8 = arith.constant 0.000000e+00 : f32
    %9 = vector.broadcast %cst_8 : f32 to vector<8x128xf32>
    %10 = arith.maximumf %8, %9 : vector<8x128xf32>
    %11 = arith.truncf %10 : vector<8x128xf32> to vector<8x128xbf16>
    %c0_9 = arith.constant 0 : index
    %c0_10 = arith.constant 0 : index
    %c0_11 = arith.constant 0 : index
    %12 = vector.load %arg5[%c0_9, %c0_10, %c0_11] : memref<1x128x128xbf16, #tpu.memory_space<vmem>>, vector<1x128x128xbf16>
    %13 = vector.shape_cast %12 : vector<1x128x128xbf16> to vector<128x128xbf16>
    %cst_12 = arith.constant dense<0.000000e+00> : vector<8x128xf32>
    %14 = tpu.matmul %11, %13, %cst_12 {dimension_numbers = #tpu.dot_dimension_numbers<[1], [0], [0], [1], [0, 0, 1, 1], [], []>} : vector<8x128xbf16>, vector<128x128xbf16>, vector<8x128xf32> -> vector<8x128xf32>
    %c0_13 = arith.constant 0 : index
    %c0_14 = arith.constant 0 : index
    %c0_15 = arith.constant 0 : index
    %15 = vector.load %arg6[%c0_13, %c0_14, %c0_15] : memref<1x1x128xf32, #tpu.memory_space<vmem>>, vector<1x1x128xf32>
    %16 = vector.shape_cast %15 : vector<1x1x128xf32> to vector<1x128xf32>
    %17 = vector.broadcast %16 : vector<1x128xf32> to vector<8x128xf32>
    %18 = arith.addf %14, %17 : vector<8x128xf32>
    %cst_16 = arith.constant 0.000000e+00 : f32
    %19 = vector.broadcast %cst_16 : f32 to vector<8x128xf32>
    %20 = arith.maximumf %18, %19 : vector<8x128xf32>
    %c0_17 = arith.constant 0 : index
    %c0_18 = arith.constant 0 : index
    %c0_19 = arith.constant 0 : index
    %21 = vector.load %arg11[%c0_17, %c0_18, %c0_19] : memref<1x8x128xf32, #tpu.memory_space<vmem>>, vector<1x8x128xf32>
    %22 = vector.shape_cast %21 : vector<1x8x128xf32> to vector<8x128xf32>
    %23 = vector.shape_cast %20 : vector<8x128xf32> to vector<1x8x128xf32>
    tpu.vector_store %arg11[%c0_17, %c0_18, %c0_19], %23 {strides = array<i32>} : memref<1x8x128xf32, #tpu.memory_space<vmem>>, vector<1x8x128xf32>,
    %24 = arith.truncf %20 : vector<8x128xf32> to vector<8x128xbf16>
    %c0_20 = arith.constant 0 : index
    %c0_21 = arith.constant 0 : index
    %c0_22 = arith.constant 0 : index
    %25 = vector.load %arg7[%c0_20, %c0_21, %c0_22] : memref<1x128x128xbf16, #tpu.memory_space<vmem>>, vector<1x128x128xbf16>
    %26 = vector.shape_cast %25 : vector<1x128x128xbf16> to vector<128x128xbf16>
    %cst_23 = arith.constant dense<0.000000e+00> : vector<8x128xf32>
    %27 = tpu.matmul %24, %26, %cst_23 {dimension_numbers = #tpu.dot_dimension_numbers<[1], [0], [0], [1], [0, 0, 1, 1], [], []>} : vector<8x128xbf16>, vector<128x128xbf16>, vector<8x128xf32> -> vector<8x128xf32>
    %c0_24 = arith.constant 0 : index
    %c0_25 = arith.constant 0 : index
    %c0_26 = arith.constant 0 : index
    %28 = vector.load %arg8[%c0_24, %c0_25, %c0_26] : memref<1x1x128xf32, #tpu.memory_space<vmem>>, vector<1x1x128xf32>
    %29 = vector.shape_cast %28 : vector<1x1x128xf32> to vector<1x128xf32>
    %30 = vector.broadcast %29 : vector<1x128xf32> to vector<8x128xf32>
    %31 = arith.addf %27, %30 : vector<8x128xf32>
    %cst_27 = arith.constant 0.000000e+00 : f32
    %32 = vector.broadcast %cst_27 : f32 to vector<8x128xf32>
    %33 = arith.maximumf %31, %32 : vector<8x128xf32>
    %34 = arith.truncf %33 : vector<8x128xf32> to vector<8x128xbf16>
    %c0_28 = arith.constant 0 : index
    %c0_29 = arith.constant 0 : index
    %c0_30 = arith.constant 0 : index
    %35 = vector.load %arg9[%c0_28, %c0_29, %c0_30] : memref<1x128x128xbf16, #tpu.memory_space<vmem>>, vector<1x128x128xbf16>
    %36 = vector.shape_cast %35 : vector<1x128x128xbf16> to vector<128x128xbf16>
    %cst_31 = arith.constant dense<0.000000e+00> : vector<8x128xf32>
    %37 = tpu.matmul %34, %36, %cst_31 {dimension_numbers = #tpu.dot_dimension_numbers<[1], [0], [0], [1], [0, 0, 1, 1], [], []>} : vector<8x128xbf16>, vector<128x128xbf16>, vector<8x128xf32> -> vector<8x128xf32>
    %c0_32 = arith.constant 0 : index
    %c0_33 = arith.constant 0 : index
    %c0_34 = arith.constant 0 : index
    %38 = vector.load %arg10[%c0_32, %c0_33, %c0_34] : memref<1x1x128xf32, #tpu.memory_space<vmem>>, vector<1x1x128xf32>
    %39 = vector.shape_cast %38 : vector<1x1x128xf32> to vector<1x128xf32>
    %40 = vector.broadcast %39 : vector<1x128xf32> to vector<8x128xf32>
    %41 = arith.addf %37, %40 : vector<8x128xf32>
    %cst_35 = arith.constant 0.000000e+00 : f32
    %42 = vector.broadcast %cst_35 : f32 to vector<8x128xf32>
    %43 = arith.maximumf %41, %42 : vector<8x128xf32>
    %c0_36 = arith.constant 0 : index
    %c0_37 = arith.constant 0 : index
    %c0_38 = arith.constant 0 : index
    %44 = vector.load %arg12[%c0_36, %c0_37, %c0_38] : memref<1x8x128xf32, #tpu.memory_space<vmem>>, vector<1x8x128xf32>
    %45 = vector.shape_cast %44 : vector<1x8x128xf32> to vector<8x128xf32>
    %46 = vector.shape_cast %43 : vector<8x128xf32> to vector<1x8x128xf32>
    tpu.vector_store %arg12[%c0_36, %c0_37, %c0_38], %46 {strides = array<i32>} : memref<1x8x128xf32, #tpu.memory_space<vmem>>, vector<1x8x128xf32>,
    return
  }
  func.func @transform_0(%arg0: i32, %arg1: i32) -> (i32, i32, i32) {
    %c0_i32 = arith.constant 0 : i32
    %c0_i32_0 = arith.constant 0 : i32
    return %arg0, %arg1, %c0_i32 : i32, i32, i32
  }
  func.func @transform_1(%arg0: i32, %arg1: i32) -> (i32, i32, i32) {
    %c0_i32 = arith.constant 0 : i32
    %c0_i32_0 = arith.constant 0 : i32
    %c0_i32_1 = arith.constant 0 : i32
    return %arg0, %c0_i32, %c0_i32_0 : i32, i32, i32
  }
  func.func @transform_2(%arg0: i32, %arg1: i32) -> (i32, i32, i32) {
    %c0_i32 = arith.constant 0 : i32
    %c0_i32_0 = arith.constant 0 : i32
    %c0_i32_1 = arith.constant 0 : i32
    return %arg0, %c0_i32, %c0_i32_0 : i32, i32, i32
  }
  func.func @transform_3(%arg0: i32, %arg1: i32) -> (i32, i32, i32) {
    %c0_i32 = arith.constant 0 : i32
    %c0_i32_0 = arith.constant 0 : i32
    %c0_i32_1 = arith.constant 0 : i32
    return %arg0, %c0_i32, %c0_i32_0 : i32, i32, i32
  }
  func.func @transform_4(%arg0: i32, %arg1: i32) -> (i32, i32, i32) {
    %c0_i32 = arith.constant 0 : i32
    %c0_i32_0 = arith.constant 0 : i32
    %c0_i32_1 = arith.constant 0 : i32
    return %arg0, %c0_i32, %c0_i32_0 : i32, i32, i32
  }
  func.func @transform_5(%arg0: i32, %arg1: i32) -> (i32, i32, i32) {
    %c0_i32 = arith.constant 0 : i32
    %c0_i32_0 = arith.constant 0 : i32
    %c0_i32_1 = arith.constant 0 : i32
    return %arg0, %c0_i32, %c0_i32_0 : i32, i32, i32
  }
  func.func @transform_6(%arg0: i32, %arg1: i32) -> (i32, i32, i32) {
    %c0_i32 = arith.constant 0 : i32
    %c0_i32_0 = arith.constant 0 : i32
    %c0_i32_1 = arith.constant 0 : i32
    return %arg0, %c0_i32, %c0_i32_0 : i32, i32, i32
  }
  func.func @transform_7(%arg0: i32, %arg1: i32) -> (i32, i32, i32) {
    %c0_i32 = arith.constant 0 : i32
    %c0_i32_0 = arith.constant 0 : i32
    %c0_i32_1 = arith.constant 0 : i32
    return %arg0, %c0_i32, %c0_i32_0 : i32, i32, i32
  }
  func.func @transform_8(%arg0: i32, %arg1: i32) -> (i32, i32, i32) {
    %c0_i32 = arith.constant 0 : i32
    %c0_i32_0 = arith.constant 0 : i32
    %c0_i32_1 = arith.constant 0 : i32
    return %arg0, %c0_i32, %c0_i32_0 : i32, i32, i32
  }
  func.func @transform_9(%arg0: i32, %arg1: i32) -> (i32, i32, i32) {
    %c0_i32 = arith.constant 0 : i32
    %c0_i32_0 = arith.constant 0 : i32
    return %arg0, %arg1, %c0_i32 : i32, i32, i32
  }
  func.func @transform_10(%arg0: i32, %arg1: i32) -> (i32, i32, i32) {
    %c0_i32 = arith.constant 0 : i32
    %c0_i32_0 = arith.constant 0 : i32
    return %arg0, %arg1, %c0_i32 : i32, i32, i32
  }
}

</mosaic_0001>

<llo_original>
// kernel: multi_view_contrastive_forward.1
$region0: #{multi_view_contrastive_forward.1}
  #allocation0 [shape = 'u32[]', space=smem, size = 0x4, offset = 0x4, fixed_abs, tag = 'smem constant byte address 0x4 - core index']
  #allocation1 [shape = 'u32[72,128]{1,0:T(1,128)}', space=vmem, size = 0x9000, scoped, tag = 'internal scratch']
  %s0 = inlined_call_operand.vmem [shape: bf16[3,8,128], index: 0, kind: input, shape index: {}]
  %s1 = inlined_call_operand.hbm [shape: bf16[3,128,128], index: 1, kind: input, shape index: {}]
  %s2 = inlined_call_operand.vmem [shape: f32[3,1,128], index: 2, kind: input, shape index: {}]
  %s3 = inlined_call_operand.hbm [shape: bf16[3,128,128], index: 3, kind: input, shape index: {}]
  %s4 = inlined_call_operand.vmem [shape: f32[3,1,128], index: 4, kind: input, shape index: {}]
  %s5 = inlined_call_operand.hbm [shape: bf16[3,128,128], index: 5, kind: input, shape index: {}]
  %s6 = inlined_call_operand.vmem [shape: f32[3,1,128], index: 6, kind: input, shape index: {}]
  %s7 = inlined_call_operand.hbm [shape: bf16[3,128,128], index: 7, kind: input, shape index: {}]
  %s8 = inlined_call_operand.vmem [shape: f32[3,1,128], index: 8, kind: input, shape index: {}]
  %s9 = inlined_call_operand.vmem [shape: f32[3,8,128], index: 9, kind: output, shape index: {0}]
  %s10 = inlined_call_operand.vmem [shape: f32[3,8,128], index: 10, kind: output, shape index: {1}]
  %11 = xla_tuple %s9, %s10
  %s12 = sld [smem:[#allocation0]]
  $region93: #{multi_view_contrastive_forward.1} parent=0
    _
  %s14 = ssub.s32 1, %s12
  %s15 = scalar_select 0, %s14, %s12
  $region1: #{multi_view_contrastive_forward.1} parent=0
    #allocation2 [shape = 'u8[32768]{0}', space=vmem, size = 0x8000, scoped, tag = 'input window, operand 1, single buffered']
    #allocation3 [shape = 's32[2]{0}', space=sflag, size = 0x8, scoped, tag = 'scoped memory for multi_view_contrastive_forward.1']
    #allocation4 [shape = 'u8[32768]{0}', space=vmem, size = 0x8000, scoped, tag = 'input window, operand 3, single buffered']
    #allocation5 [shape = 's32[1]{0}', space=sflag, size = 0x4, scoped, tag = 'scoped memory for multi_view_contrastive_forward.1']
    #allocation6 [shape = 'u8[32768]{0}', space=vmem, size = 0x8000, scoped, tag = 'input window, operand 5, single buffered']
    #allocation7 [shape = 'u8[32768]{0}', space=vmem, size = 0x8000, scoped, tag = 'input window, operand 7, single buffered']
    #allocation8 [shape = 's32[1]{0}', space=sflag, size = 0x4, scoped, tag = 'scoped memory for multi_view_contrastive_forward.1']
    %16 = vsyncpa [#allocation3], 0
    %17 = vsyncpa [#allocation5], 0
    %18 = vsyncpa [#allocation8], 0
    loop: start=0, step=1, limit=5
    $region2: #{multi_view_contrastive_forward.1} parent=1 // loop_pre_header
      _
    $region3: #{multi_view_contrastive_forward.1} parent=1 // loop_header
      %s20 = sphi 0, %s24
      %p21 = scmp.ge.s32.totalorder %s20, 5
      %s27 = sphi 0, %s39
      %s28 = sphi 0, %s35
      %s29 = sphi 0, %s27
      %s30 = sphi 0, %s28
      %s31 = sphi 0, %s29
      %s32 = sphi 0, %s30
      %s44 = sphi 0, %s46
      %s47 = sphi 0, %s44
      %s48 = sphi 0, %s47
      %s64 = sphi 0, %s48
      %s70 = sphi 0, %s72
      %s73 = sphi 0, %s70
      %s74 = sphi 0, %s73
      %s90 = sphi 0, %s74
      %s96 = sphi 0, %s98
      %s99 = sphi 0, %s96
      %s100 = sphi 0, %s99
      %s116 = sphi 0, %s100
      %s122 = sphi 0, %s124
      %s125 = sphi 0, %s122
      %s126 = sphi 0, %s125
      %s142 = sphi 0, %s126
      %s148 = sphi 0, %s150
      %s151 = sphi 0, %s148
      %s152 = sphi 0, %s151
      %s168 = sphi 0, %s152
      %s174 = sphi 0, %s176
      %s177 = sphi 0, %s174
      %s178 = sphi 0, %s177
      %s194 = sphi 0, %s178
      %s200 = sphi 0, %s202
      %s203 = sphi 0, %s200
      %s204 = sphi 0, %s203
      %s220 = sphi 0, %s204
      %s226 = sphi 0, %s228
      %s229 = sphi 0, %s226
      %s230 = sphi 0, %s229
      %s246 = sphi 0, %s230
      %s252 = sphi 0, %s254
      %s255 = sphi 0, %s252
      %s256 = sphi 0, %s255
      %s272 = sphi 0, %s256
      %s280 = sphi 0, %s282
      %s283 = sphi 0, %s280
      %s284 = sphi 0, %s283
      %s300 = sphi 0, %s284
      %s308 = sphi 0, %s310
      %s311 = sphi 0, %s308
      %s312 = sphi 0, %s311
      %s328 = sphi 0, %s312
    $region4: #{multi_view_contrastive_forward.1} parent=1 // loop_header_branch
      %23 = sbr.rel (%p21) target = $region8
    $region5: #{multi_view_contrastive_forward.1} parent=1 // loop_body
      %s25 = ssub.s32 %s20, 1
      %s26 = ssub.s32 %s20, 2
      %s33 = sadd.s32 1, %s28
      %p34 = scmp.ge.s32.totalorder %s33, 1
      %s35 = scalar_select %p34, 0, %s33
      %s36 = sadd.s32 1, %s27
      %s37 = scalar_select %p34, %s36, %s27
      %p38 = scmp.ge.s32.totalorder %s37, 3
      %s39 = scalar_select %p38, 0, %s37
      %s40 = ssub.s32 %s27, %s39
      %s41 = ssub.s32 %s28, %s35
      %s42 = sor.u32 %s40, %s41
      %p43 = scmp.eq.s32.totalorder %s42, 0
      %s45 = sadd.s32 %s44, 1
      %s46 = scalar_select %p43, %s44, %s45
      %p49 = pneg %p43
      %p50 = scmp.eq.s32.totalorder %s20, 2
      %p51 = por %p49, %p50
      %p52 = scmp.ne.s32.totalorder %s44, %s47
      %p53 = scmp.eq.s32.totalorder %s20, 0
      %p54 = por %p52, %p53
      %p55 = scmp.ne.s32.totalorder %s44, %s47
      %p56 = scmp.eq.s32.totalorder %s25, 2
      %p57 = por %p55, %p56
      %p58 = scmp.ne.s32.totalorder %s47, %s48
      %p59 = scmp.eq.s32.totalorder %s25, 0
      %p60 = por %p58, %p59
      %p61 = scmp.ne.s32.totalorder %s47, %s48
      %p62 = scmp.eq.s32.totalorder %s26, 2
      %p63 = por %p61, %p62
      %p65 = scmp.ne.s32.totalorder %s48, %s64
      %p66 = scmp.eq.s32.totalorder %s26, 0
      %p67 = por %p65, %p66
      %s68 = ssub.s32 %s27, %s39
      %p69 = scmp.eq.s32.totalorder %s68, 0
      %s71 = sadd.s32 %s70, 1
      %s72 = scalar_select %p69, %s70, %s71
      %p75 = pneg %p69
      %p76 = scmp.eq.s32.totalorder %s20, 2
      %p77 = por %p75, %p76
      %p78 = scmp.ne.s32.totalorder %s70, %s73
      %p79 = scmp.eq.s32.totalorder %s20, 0
      %p80 = por %p78, %p79
      %p81 = scmp.ne.s32.totalorder %s70, %s73
      %p82 = scmp.eq.s32.totalorder %s25, 2
      %p83 = por %p81, %p82
      %p84 = scmp.ne.s32.totalorder %s73, %s74
      %p85 = scmp.eq.s32.totalorder %s25, 0
      %p86 = por %p84, %p85
      %p87 = scmp.ne.s32.totalorder %s73, %s74
      %p88 = scmp.eq.s32.totalorder %s26, 2
      %p89 = por %p87, %p88
      %p91 = scmp.ne.s32.totalorder %s74, %s90
      %p92 = scmp.eq.s32.totalorder %s26, 0
      %p93 = por %p91, %p92
      %s94 = ssub.s32 %s27, %s39
      %p95 = scmp.eq.s32.totalorder %s94, 0
      %s97 = sadd.s32 %s96, 1
      %s98 = scalar_select %p95, %s96, %s97
      %p101 = pneg %p95
      %p102 = scmp.eq.s32.totalorder %s20, 2
      %p103 = por %p101, %p102
      %p104 = scmp.ne.s32.totalorder %s96, %s99
      %p105 = scmp.eq.s32.totalorder %s20, 0
      %p106 = por %p104, %p105
      %p107 = scmp.ne.s32.totalorder %s96, %s99
      %p108 = scmp.eq.s32.totalorder %s25, 2
      %p109 = por %p107, %p108
      %p110 = scmp.ne.s32.totalorder %s99, %s100
      %p111 = scmp.eq.s32.totalorder %s25, 0
      %p112 = por %p110, %p111
      %p113 = scmp.ne.s32.totalorder %s99, %s100
      %p114 = scmp.eq.s32.totalorder %s26, 2
      %p115 = por %p113, %p114
      %p117 = scmp.ne.s32.totalorder %s100, %s116
      %p118 = scmp.eq.s32.totalorder %s26, 0
      %p119 = por %p117, %p118
      %s120 = ssub.s32 %s27, %s39
      %p121 = scmp.eq.s32.totalorder %s120, 0
      %s123 = sadd.s32 %s122, 1
      %s124 = scalar_select %p121, %s122, %s123
      %p127 = pneg %p121
      %p128 = scmp.eq.s32.totalorder %s20, 2
      %p129 = por %p127, %p128
      %p130 = scmp.ne.s32.totalorder %s122, %s125
      %p131 = scmp.eq.s32.totalorder %s20, 0
      %p132 = por %p130, %p131
      %p133 = scmp.ne.s32.totalorder %s122, %s125
      %p134 = scmp.eq.s32.totalorder %s25, 2
      %p135 = por %p133, %p134
      %p136 = scmp.ne.s32.totalorder %s125, %s126
      %p137 = scmp.eq.s32.totalorder %s25, 0
      %p138 = por %p136, %p137
      %p139 = scmp.ne.s32.totalorder %s125, %s126
      %p140 = scmp.eq.s32.totalorder %s26, 2
      %p141 = por %p139, %p140
      %p143 = scmp.ne.s32.totalorder %s126, %s142
      %p144 = scmp.eq.s32.totalorder %s26, 0
      %p145 = por %p143, %p144
      %s146 = ssub.s32 %s27, %s39
      %p147 = scmp.eq.s32.totalorder %s146, 0
      %s149 = sadd.s32 %s148, 1
      %s150 = scalar_select %p147, %s148, %s149
      %p153 = pneg %p147
      %p154 = scmp.eq.s32.totalorder %s20, 2
      %p155 = por %p153, %p154
      %p156 = scmp.ne.s32.totalorder %s148, %s151
      %p157 = scmp.eq.s32.totalorder %s20, 0
      %p158 = por %p156, %p157
      %p159 = scmp.ne.s32.totalorder %s148, %s151
      %p160 = scmp.eq.s32.totalorder %s25, 2
      %p161 = por %p159, %p160
      %p162 = scmp.ne.s32.totalorder %s151, %s152
      %p163 = scmp.eq.s32.totalorder %s25, 0
      %p164 = por %p162, %p163
      %p165 = scmp.ne.s32.totalorder %s151, %s152
      %p166 = scmp.eq.s32.totalorder %s26, 2
      %p167 = por %p165, %p166
      %p169 = scmp.ne.s32.totalorder %s152, %s168
      %p170 = scmp.eq.s32.totalorder %s26, 0
      %p171 = por %p169, %p170
      %s172 = ssub.s32 %s27, %s39
      %p173 = scmp.eq.s32.totalorder %s172, 0
      %s175 = sadd.s32 %s174, 1
      %s176 = scalar_select %p173, %s174, %s175
      %p179 = pneg %p173
      %p180 = scmp.eq.s32.totalorder %s20, 2
      %p181 = por %p179, %p180
      %p182 = scmp.ne.s32.totalorder %s174, %s177
      %p183 = scmp.eq.s32.totalorder %s20, 0
      %p184 = por %p182, %p183
      %p185 = scmp.ne.s32.totalorder %s174, %s177
      %p186 = scmp.eq.s32.totalorder %s25, 2
      %p187 = por %p185, %p186
      %p188 = scmp.ne.s32.totalorder %s177, %s178
      %p189 = scmp.eq.s32.totalorder %s25, 0
      %p190 = por %p188, %p189
      %p191 = scmp.ne.s32.totalorder %s177, %s178
      %p192 = scmp.eq.s32.totalorder %s26, 2
      %p193 = por %p191, %p192
      %p195 = scmp.ne.s32.totalorder %s178, %s194
      %p196 = scmp.eq.s32.totalorder %s26, 0
      %p197 = por %p195, %p196
      %s198 = ssub.s32 %s27, %s39
      %p199 = scmp.eq.s32.totalorder %s198, 0
      %s201 = sadd.s32 %s200, 1
      %s202 = scalar_select %p199, %s200, %s201
      %p205 = pneg %p199
      %p206 = scmp.eq.s32.totalorder %s20, 2
      %p207 = por %p205, %p206
      %p208 = scmp.ne.s32.totalorder %s200, %s203
      %p209 = scmp.eq.s32.totalorder %s20, 0
      %p210 = por %p208, %p209
      %p211 = scmp.ne.s32.totalorder %s200, %s203
      %p212 = scmp.eq.s32.totalorder %s25, 2
      %p213 = por %p211, %p212
      %p214 = scmp.ne.s32.totalorder %s203, %s204
      %p215 = scmp.eq.s32.totalorder %s25, 0
      %p216 = por %p214, %p215
      %p217 = scmp.ne.s32.totalorder %s203, %s204
      %p218 = scmp.eq.s32.totalorder %s26, 2
      %p219 = por %p217, %p218
      %p221 = scmp.ne.s32.totalorder %s204, %s220
      %p222 = scmp.eq.s32.totalorder %s26, 0
      %p223 = por %p221, %p222
      %s224 = ssub.s32 %s27, %s39
      %p225 = scmp.eq.s32.totalorder %s224, 0
      %s227 = sadd.s32 %s226, 1
      %s228 = scalar_select %p225, %s226, %s227
      %p231 = pneg %p225
      %p232 = scmp.eq.s32.totalorder %s20, 2
      %p233 = por %p231, %p232
      %p234 = scmp.ne.s32.totalorder %s226, %s229
      %p235 = scmp.eq.s32.totalorder %s20, 0
      %p236 = por %p234, %p235
      %p237 = scmp.ne.s32.totalorder %s226, %s229
      %p238 = scmp.eq.s32.totalorder %s25, 2
      %p239 = por %p237, %p238
      %p240 = scmp.ne.s32.totalorder %s229, %s230
      %p241 = scmp.eq.s32.totalorder %s25, 0
      %p242 = por %p240, %p241
      %p243 = scmp.ne.s32.totalorder %s229, %s230
      %p244 = scmp.eq.s32.totalorder %s26, 2
      %p245 = por %p243, %p244
      %p247 = scmp.ne.s32.totalorder %s230, %s246
      %p248 = scmp.eq.s32.totalorder %s26, 0
      %p249 = por %p247, %p248
      %s250 = ssub.s32 %s27, %s39
      %p251 = scmp.eq.s32.totalorder %s250, 0
      %s253 = sadd.s32 %s252, 1
      %s254 = scalar_select %p251, %s252, %s253
      %p257 = pneg %p251
      %p258 = scmp.eq.s32.totalorder %s20, 2
      %p259 = por %p257, %p258
      %p260 = scmp.ne.s32.totalorder %s252, %s255
      %p261 = scmp.eq.s32.totalorder %s20, 0
      %p262 = por %p260, %p261
      %p263 = scmp.ne.s32.totalorder %s252, %s255
      %p264 = scmp.eq.s32.totalorder %s25, 2
      %p265 = por %p263, %p264
      %p266 = scmp.ne.s32.totalorder %s255, %s256
      %p267 = scmp.eq.s32.totalorder %s25, 0
      %p268 = por %p266, %p267
      %p269 = scmp.ne.s32.totalorder %s255, %s256
      %p270 = scmp.eq.s32.totalorder %s26, 2
      %p271 = por %p269, %p270
      %p273 = scmp.ne.s32.totalorder %s256, %s272
      %p274 = scmp.eq.s32.totalorder %s26, 0
      %p275 = por %p273, %p274
      %s276 = ssub.s32 %s27, %s39
      %s277 = ssub.s32 %s28, %s35
      %s278 = sor.u32 %s276, %s277
      %p279 = scmp.eq.s32.totalorder %s278, 0
      %s281 = sadd.s32 %s280, 1
      %s282 = scalar_select %p279, %s280, %s281
      %p285 = pneg %p279
      %p286 = scmp.eq.s32.totalorder %s20, 2
      %p287 = por %p285, %p286
      %p288 = scmp.ne.s32.totalorder %s280, %s283
      %p289 = scmp.eq.s32.totalorder %s20, 0
      %p290 = por %p288, %p289
      %p291 = scmp.ne.s32.totalorder %s280, %s283
      %p292 = scmp.eq.s32.totalorder %s25, 2
      %p293 = por %p291, %p292
      %p294 = scmp.ne.s32.totalorder %s283, %s284
      %p295 = scmp.eq.s32.totalorder %s25, 0
      %p296 = por %p294, %p295
      %p297 = scmp.ne.s32.totalorder %s283, %s284
      %p298 = scmp.eq.s32.totalorder %s26, 2
      %p299 = por %p297, %p298
      %p301 = scmp.ne.s32.totalorder %s284, %s300
      %p302 = scmp.eq.s32.totalorder %s26, 0
      %p303 = por %p301, %p302
      %s304 = ssub.s32 %s27, %s39
      %s305 = ssub.s32 %s28, %s35
      %s306 = sor.u32 %s304, %s305
      %p307 = scmp.eq.s32.totalorder %s306, 0
      %s309 = sadd.s32 %s308, 1
      %s310 = scalar_select %p307, %s308, %s309
      %p313 = pneg %p307
      %p314 = scmp.eq.s32.totalorder %s20, 2
      %p315 = por %p313, %p314
      %p316 = scmp.ne.s32.totalorder %s308, %s311
      %p317 = scmp.eq.s32.totalorder %s20, 0
      %p318 = por %p316, %p317
      %p319 = scmp.ne.s32.totalorder %s308, %s311
      %p320 = scmp.eq.s32.totalorder %s25, 2
      %p321 = por %p319, %p320
      %p322 = scmp.ne.s32.totalorder %s311, %s312
      %p323 = scmp.eq.s32.totalorder %s25, 0
      %p324 = por %p322, %p323
      %p325 = scmp.ne.s32.totalorder %s311, %s312
      %p326 = scmp.eq.s32.totalorder %s26, 2
      %p327 = por %p325, %p326
      %p329 = scmp.ne.s32.totalorder %s312, %s328
      %p330 = scmp.eq.s32.totalorder %s26, 0
      %p331 = por %p329, %p330
      %p332 = scmp.le.s32.totalorder 1, %s20
      %p333 = scmp.lt.s32.totalorder %s20, 4
      %p334 = pnand %p332, %p333
      %p335 = pneg %p334
      // Predicated region
      $region9: #{multi_view_contrastive_forward.1} parent=5 // pred_check
        _
      $region10: #{multi_view_contrastive_forward.1} parent=5 // pred_check_branch
        %337 = sbr.rel (%p334) target = $region12
      $region11: #{multi_view_contrastive_forward.1} parent=5 // pred_region
        %s338 = ssub.s32 %s20, 1
        // Predicated region
        $region13: #{multi_view_contrastive_forward.1} parent=11 // pred_check
          %p339 = pneg %p86
        $region14: #{multi_view_contrastive_forward.1} parent=11 // pred_check_branch
          %341 = sbr.rel (%p339) target = $region16
        $region15: #{multi_view_contrastive_forward.1} parent=11 // pred_region
          %343 = vsyncadd [#allocation3], 0
          %s344 = smul.addr %s29, 16
          %s345 = smul.addr %s344, 4
          %s346 = scalar_lea.hbm %s1, %s345
          %s347 = sshll.u32 %s346, 4
          %s348 = int_to_ptr.hbm [resolvable:$true] %s347
          %s349 = sshll.u32 [#allocation2], 4
          %s350 = int_to_ptr.vmem [resolvable:$true] %s349
          %355 = dma.hbm_to_vmem [thread:$0]  %s348, 1024, %s350, [#allocation3], 64, 64, 4
        $region16: #{multi_view_contrastive_forward.1} parent=11 // pred_fallthru
          _
        // Predicated region
        $region17: #{multi_view_contrastive_forward.1} parent=11 // pred_check
          %p356 = pneg %p112
        $region18: #{multi_view_contrastive_forward.1} parent=11 // pred_check_branch
          %358 = sbr.rel (%p356) target = $region20
        $region19: #{multi_view_contrastive_forward.1} parent=11 // pred_region
          %p359 = scmp.lt.s32.totalorder %s29, 2
          %s360 = scalar_select %p359, %s29, 2
          %s361 = scalar_lea.vmem %s2, %s360
        $region20: #{multi_view_contrastive_forward.1} parent=11 // pred_fallthru
          _
        // Predicated region
        $region21: #{multi_view_contrastive_forward.1} parent=11 // pred_check
          %p362 = pneg %p138
        $region22: #{multi_view_contrastive_forward.1} parent=11 // pred_check_branch
          %364 = sbr.rel (%p362) target = $region24
        $region23: #{multi_view_contrastive_forward.1} parent=11 // pred_region
          %366 = vsyncadd [#allocation5], 0
          %s367 = smul.addr %s29, 16
          %s368 = smul.addr %s367, 4
          %s369 = scalar_lea.hbm %s3, %s368
          %s370 = sshll.u32 %s369, 4
          %s371 = int_to_ptr.hbm [resolvable:$true] %s370
          %s372 = sshll.u32 [#allocation4], 4
          %s373 = int_to_ptr.vmem [resolvable:$true] %s372
          %378 = dma.hbm_to_vmem [thread:$0]  %s371, 1024, %s373, [#allocation5], 64, 64, 4
        $region24: #{multi_view_contrastive_forward.1} parent=11 // pred_fallthru
          _
        // Predicated region
        $region25: #{multi_view_contrastive_forward.1} parent=11 // pred_check
          %p379 = pneg %p164
        $region26: #{multi_view_contrastive_forward.1} parent=11 // pred_check_branch
          %381 = sbr.rel (%p379) target = $region28
        $region27: #{multi_view_contrastive_forward.1} parent=11 // pred_region
          %p382 = scmp.lt.s32.totalorder %s29, 2
          %s383 = scalar_select %p382, %s29, 2
          %s384 = scalar_lea.vmem %s4, %s383
        $region28: #{multi_view_contrastive_forward.1} parent=11 // pred_fallthru
          _
        // Predicated region
        $region29: #{multi_view_contrastive_forward.1} parent=11 // pred_check
          %p385 = pneg %p190
        $region30: #{multi_view_contrastive_forward.1} parent=11 // pred_check_branch
          %387 = sbr.rel (%p385) target = $region32
        $region31: #{multi_view_contrastive_forward.1} parent=11 // pred_region
          %389 = vsyncadd [#allocation5], 0
          %s390 = smul.addr %s29, 16
          %s391 = smul.addr %s390, 4
          %s392 = scalar_lea.hbm %s5, %s391
          %s393 = sshll.u32 %s392, 4
          %s394 = int_to_ptr.hbm [resolvable:$true] %s393
          %s395 = sshll.u32 [#allocation6], 4
          %s396 = int_to_ptr.vmem [resolvable:$true] %s395
          %401 = dma.hbm_to_vmem [thread:$0]  %s394, 1024, %s396, [#allocation5], 64, 64, 4
        $region32: #{multi_view_contrastive_forward.1} parent=11 // pred_fallthru
          _
        // Predicated region
        $region33: #{multi_view_contrastive_forward.1} parent=11 // pred_check
          %p402 = pneg %p216
        $region34: #{multi_view_contrastive_forward.1} parent=11 // pred_check_branch
          %404 = sbr.rel (%p402) target = $region36
        $region35: #{multi_view_contrastive_forward.1} parent=11 // pred_region
          %p405 = scmp.lt.s32.totalorder %s29, 2
          %s406 = scalar_select %p405, %s29, 2
          %s407 = scalar_lea.vmem %s6, %s406
        $region36: #{multi_view_contrastive_forward.1} parent=11 // pred_fallthru
          _
        // Predicated region
        $region37: #{multi_view_contrastive_forward.1} parent=11 // pred_check
          %p408 = pneg %p242
        $region38: #{multi_view_contrastive_forward.1} parent=11 // pred_check_branch
          %410 = sbr.rel (%p408) target = $region40
        $region39: #{multi_view_contrastive_forward.1} parent=11 // pred_region
          %412 = vsyncadd [#allocation8], 0
          %s413 = smul.addr %s29, 16
          %s414 = smul.addr %s413, 4
          %s415 = scalar_lea.hbm %s7, %s414
          %s416 = sshll.u32 %s415, 4
          %s417 = int_to_ptr.hbm [resolvable:$true] %s416
          %s418 = sshll.u32 [#allocation7], 4
          %s419 = int_to_ptr.vmem [resolvable:$true] %s418
          %424 = dma.hbm_to_vmem [thread:$0]  %s417, 1024, %s419, [#allocation8], 64, 64, 4
        $region40: #{multi_view_contrastive_forward.1} parent=11 // pred_fallthru
          _
        // Predicated region
        $region41: #{multi_view_contrastive_forward.1} parent=11 // pred_check
          %p425 = pneg %p268
        $region42: #{multi_view_contrastive_forward.1} parent=11 // pred_check_branch
          %427 = sbr.rel (%p425) target = $region44
        $region43: #{multi_view_contrastive_forward.1} parent=11 // pred_region
          %p428 = scmp.lt.s32.totalorder %s29, 2
          %s429 = scalar_select %p428, %s29, 2
          %s430 = scalar_lea.vmem %s8, %s429
        $region44: #{multi_view_contrastive_forward.1} parent=11 // pred_fallthru
          _
      $region12: #{multi_view_contrastive_forward.1} parent=5 // pred_fallthru
        _
      %p431 = scmp.lt.s32.totalorder %s20, 3
      // Predicated region
      $region45: #{multi_view_contrastive_forward.1} parent=5 // pred_check
        %p432 = pneg %p431
      $region46: #{multi_view_contrastive_forward.1} parent=5 // pred_check_branch
        %434 = sbr.rel (%p432) target = $region48
      $region47: #{multi_view_contrastive_forward.1} parent=5 // pred_region
        // Predicated region
        $region49: #{multi_view_contrastive_forward.1} parent=47 // pred_check
          %p435 = pneg %p54
        $region50: #{multi_view_contrastive_forward.1} parent=47 // pred_check_branch
          %437 = sbr.rel (%p435) target = $region52
        $region51: #{multi_view_contrastive_forward.1} parent=47 // pred_region
          %p438 = scmp.lt.s32.totalorder %s27, 2
          %s439 = scalar_select %p438, %s27, 2
          %p440 = scmp.lt.s32.totalorder %s28, 0
          %s441 = scalar_select %p440, %s28, 0
          %s442 = sadd.s32 %s441, %s439
          %s443 = smul.addr %s442, 4
          %s444 = scalar_lea.vmem %s0, %s443
        $region52: #{multi_view_contrastive_forward.1} parent=47 // pred_fallthru
          _
      $region48: #{multi_view_contrastive_forward.1} parent=5 // pred_fallthru
        _
      %p445 = scmp.le.s32.totalorder 1, %s20
      %p446 = scmp.lt.s32.totalorder %s20, 4
      %p447 = pnand %p445, %p446
      %p448 = pneg %p447
      // Predicated region
      $region53: #{multi_view_contrastive_forward.1} parent=5 // pred_check
        _
      $region54: #{multi_view_contrastive_forward.1} parent=5 // pred_check_branch
        %450 = sbr.rel (%p447) target = $region56
      $region55: #{multi_view_contrastive_forward.1} parent=5 // pred_region
        %s451 = ssub.s32 %s20, 1
        // Predicated region
        $region57: #{multi_view_contrastive_forward.1} parent=55 // pred_check
          %p452 = pneg %p86
        $region58: #{multi_view_contrastive_forward.1} parent=55 // pred_check_branch
          %454 = sbr.rel (%p452) target = $region60
        $region59: #{multi_view_contrastive_forward.1} parent=55 // pred_region
          %456 = dma.done [#allocation3], 1024
        $region60: #{multi_view_contrastive_forward.1} parent=55 // pred_fallthru
          _
        // Predicated region
        $region61: #{multi_view_contrastive_forward.1} parent=55 // pred_check
          %p457 = pneg %p138
        $region62: #{multi_view_contrastive_forward.1} parent=55 // pred_check_branch
          %459 = sbr.rel (%p457) target = $region64
        $region63: #{multi_view_contrastive_forward.1} parent=55 // pred_region
          %461 = dma.done [#allocation5], 1024
        $region64: #{multi_view_contrastive_forward.1} parent=55 // pred_fallthru
          _
        // Predicated region
        $region65: #{multi_view_contrastive_forward.1} parent=55 // pred_check
          %p462 = pneg %p190
        $region66: #{multi_view_contrastive_forward.1} parent=55 // pred_check_branch
          %464 = sbr.rel (%p462) target = $region68
        $region67: #{multi_view_contrastive_forward.1} parent=55 // pred_region
          %466 = dma.done [#allocation5], 1024
        $region68: #{multi_view_contrastive_forward.1} parent=55 // pred_fallthru
          _
        // Predicated region
        $region69: #{multi_view_contrastive_forward.1} parent=55 // pred_check
          %p467 = pneg %p242
        $region70: #{multi_view_contrastive_forward.1} parent=55 // pred_check_branch
          %469 = sbr.rel (%p467) target = $region72
        $region71: #{multi_view_contrastive_forward.1} parent=55 // pred_region
          %471 = dma.done [#allocation8], 1024
        $region72: #{multi_view_contrastive_forward.1} parent=55 // pred_fallthru
          _
        %p472 = scmp.lt.s32.totalorder %s29, 2
        %s473 = scalar_select %p472, %s29, 2
        %p474 = scmp.lt.s32.totalorder %s30, 0
        %s475 = scalar_select %p474, %s30, 0
        %s476 = sadd.s32 %s475, %s473
        %s477 = smul.addr %s476, 4
        %s478 = scalar_lea.vmem %s0, %s477
        %p479 = pneg %p60
        %p480 = pneg %p57
        %p481 = pneg %p86
        %p482 = pneg %p83
        %p483 = scmp.lt.s32.totalorder %s29, 2
        %s484 = scalar_select %p483, %s29, 2
        %s485 = scalar_lea.vmem %s2, %s484
        %p486 = pneg %p112
        %p487 = pneg %p109
        %p488 = pneg %p138
        %p489 = pneg %p135
        %p490 = scmp.lt.s32.totalorder %s29, 2
        %s491 = scalar_select %p490, %s29, 2
        %s492 = scalar_lea.vmem %s4, %s491
        %p493 = pneg %p164
        %p494 = pneg %p161
        %p495 = pneg %p190
        %p496 = pneg %p187
        %p497 = scmp.lt.s32.totalorder %s29, 2
        %s498 = scalar_select %p497, %s29, 2
        %s499 = scalar_lea.vmem %s6, %s498
        %p500 = pneg %p216
        %p501 = pneg %p213
        %p502 = pneg %p242
        %p503 = pneg %p239
        %p504 = scmp.lt.s32.totalorder %s29, 2
        %s505 = scalar_select %p504, %s29, 2
        %s506 = scalar_lea.vmem %s8, %s505
        %p507 = pneg %p268
        %p508 = pneg %p265
        %p509 = pneg %p296
        %p510 = pneg %p293
        %p511 = scmp.lt.s32.totalorder %s29, 2
        %s512 = scalar_select %p511, %s29, 2
        %p513 = scmp.lt.s32.totalorder %s30, 0
        %s514 = scalar_select %p513, %s30, 0
        %s515 = sadd.s32 %s514, %s512
        %s516 = smul.addr %s515, 8
        %s517 = scalar_lea.vmem %s9, %s516
        %p518 = pneg %p324
        %p519 = pneg %p321
        %p520 = scmp.lt.s32.totalorder %s29, 2
        %s521 = scalar_select %p520, %s29, 2
        %p522 = scmp.lt.s32.totalorder %s30, 0
        %s523 = scalar_select %p522, %s30, 0
        %s524 = sadd.s32 %s523, %s521
        %s525 = smul.addr %s524, 8
        %s526 = scalar_lea.vmem %s10, %s525
        %p527 = scmp.lt.s32.totalorder %s29, 2
        %s528 = scalar_select %p527, %s29, 2
        %p529 = scmp.lt.s32.totalorder %s30, 0
        %s530 = scalar_select %p529, %s30, 0
        %s531 = sadd.s32 %s530, %s528
        %s532 = smul.addr %s531, 4
        %s533 = scalar_lea.vmem %s0, %s532
        %p534 = scmp.lt.s32.totalorder %s29, 2
        %s535 = scalar_select %p534, %s29, 2
        %s536 = scalar_lea.vmem %s2, %s535
        %p537 = scmp.lt.s32.totalorder %s29, 2
        %s538 = scalar_select %p537, %s29, 2
        %s539 = scalar_lea.vmem %s4, %s538
        %p540 = scmp.lt.s32.totalorder %s29, 2
        %s541 = scalar_select %p540, %s29, 2
        %s542 = scalar_lea.vmem %s6, %s541
        %p543 = scmp.lt.s32.totalorder %s29, 2
        %s544 = scalar_select %p543, %s29, 2
        %s545 = scalar_lea.vmem %s8, %s544
        %p546 = scmp.lt.s32.totalorder %s29, 2
        %s547 = scalar_select %p546, %s29, 2
        %p548 = scmp.lt.s32.totalorder %s30, 0
        %s549 = scalar_select %p548, %s30, 0
        %s550 = sadd.s32 %s549, %s547
        %s551 = smul.addr %s550, 8
        %s552 = scalar_lea.vmem %s9, %s551
        %p553 = scmp.lt.s32.totalorder %s29, 2
        %s554 = scalar_select %p553, %s29, 2
        %p555 = scmp.lt.s32.totalorder %s30, 0
        %s556 = scalar_select %p555, %s30, 0
        %s557 = sadd.s32 %s556, %s554
        %s558 = smul.addr %s557, 8
        %s559 = scalar_lea.vmem %s10, %s558
        %v560 = vld [vmem:[%s533] sm:$0xf]
        %v561 = vld [vmem:[#allocation2] sm:$0xf]
        %v562 = vld [vmem:[#allocation2 + $0x4] sm:$0xf]
        %v563 = vld [vmem:[#allocation2 + $0x8] sm:$0xf]
        %v564 = vld [vmem:[#allocation2 + $0xc] sm:$0xf]
        %v565 = vld [vmem:[#allocation2 + $0x10] sm:$0xf]
        %v566 = vld [vmem:[#allocation2 + $0x14] sm:$0xf]
        %v567 = vld [vmem:[#allocation2 + $0x18] sm:$0xf]
        %v568 = vld [vmem:[#allocation2 + $0x1c] sm:$0xf]
        %v569 = vld [vmem:[#allocation2 + $0x20] sm:$0xf]
        %v570 = vld [vmem:[#allocation2 + $0x24] sm:$0xf]
        %v571 = vld [vmem:[#allocation2 + $0x28] sm:$0xf]
        %v572 = vld [vmem:[#allocation2 + $0x2c] sm:$0xf]
        %v573 = vld [vmem:[#allocation2 + $0x30] sm:$0xf]
        %v574 = vld [vmem:[#allocation2 + $0x34] sm:$0xf]
        %v575 = vld [vmem:[#allocation2 + $0x38] sm:$0xf]
        %v576 = vld [vmem:[#allocation2 + $0x3c] sm:$0xf]
        %v577 = vld [vmem:[%s536] sm:$0x1]
        %v579 = vperm.slane %v577, 0
        %v597 = vunpack.c.l.b16 %v561
        %v598 = vunpack.c.l.b16 %v562
        %v599 = vunpack.c.l.b16 %v563
        %v600 = vunpack.c.l.b16 %v564
        %v601 = vunpack.c.l.b16 %v565
        %v602 = vunpack.c.l.b16 %v566
        %v603 = vunpack.c.l.b16 %v567
        %v604 = vunpack.c.l.b16 %v568
        %v605 = vunpack.c.l.b16 %v569
        %v606 = vunpack.c.l.b16 %v570
        %v607 = vunpack.c.l.b16 %v571
        %v608 = vunpack.c.l.b16 %v572
        %v609 = vunpack.c.l.b16 %v573
        %v610 = vunpack.c.l.b16 %v574
        %v611 = vunpack.c.l.b16 %v575
        %v612 = vunpack.c.l.b16 %v576
        %v613 = vpack.c.b16 %v598, %v597
        %v614 = vpack.c.b16 %v600, %v599
        %v615 = vpack.c.b16 %v602, %v601
        %v616 = vpack.c.b16 %v604, %v603
        %v617 = vpack.c.b16 %v606, %v605
        %v618 = vpack.c.b16 %v608, %v607
        %v619 = vpack.c.b16 %v610, %v609
        %v620 = vpack.c.b16 %v612, %v611
        %629 = vmatpush.bf16.msra.mxu0 %v620
        %630 = vmatpush.bf16.msra.mxu0 %v619
        %631 = vmatpush.bf16.msra.mxu0 %v618
        %632 = vmatpush.bf16.msra.mxu0 %v617
        %633 = vmatpush.bf16.msra.mxu0 %v616
        %634 = vmatpush.bf16.msra.mxu0 %v615
        %635 = vmatpush.bf16.msra.mxu0 %v614
        %636 = vmatpush.bf16.msra.mxu0 %v613
        %637 = vmatmul.bf16.gmra.mxu0 %v560
        %v638 = vpop.f32.mrf.mxu0
        %v639 = vadd.f32 %v579, %v638
        %v640 = vpop.f32.mrf.mxu0
        %641 = vdwg.mxu0
        %v642 = vmax.f32 %v639, 0.0
        %v643 = vpack.c.bf16 %v642, %v642
        %v644 = vld [vmem:[#allocation4] sm:$0xf]
        %v645 = vld [vmem:[#allocation4 + $0x4] sm:$0xf]
        %v646 = vld [vmem:[#allocation4 + $0x8] sm:$0xf]
        %v647 = vld [vmem:[#allocation4 + $0xc] sm:$0xf]
        %v648 = vld [vmem:[#allocation4 + $0x10] sm:$0xf]
        %v649 = vld [vmem:[#allocation4 + $0x14] sm:$0xf]
        %v650 = vld [vmem:[#allocation4 + $0x18] sm:$0xf]
        %v651 = vld [vmem:[#allocation4 + $0x1c] sm:$0xf]
        %v652 = vld [vmem:[#allocation4 + $0x20] sm:$0xf]
        %v653 = vld [vmem:[#allocation4 + $0x24] sm:$0xf]
        %v654 = vld [vmem:[#allocation4 + $0x28] sm:$0xf]
        %v655 = vld [vmem:[#allocation4 + $0x2c] sm:$0xf]
        %v656 = vld [vmem:[#allocation4 + $0x30] sm:$0xf]
        %v657 = vld [vmem:[#allocation4 + $0x34] sm:$0xf]
        %v658 = vld [vmem:[#allocation4 + $0x38] sm:$0xf]
        %v659 = vld [vmem:[#allocation4 + $0x3c] sm:$0xf]
        %v660 = vld [vmem:[%s539] sm:$0x1]
        %v662 = vperm.slane %v660, 0
        %v680 = vunpack.c.l.b16 %v644
        %v681 = vunpack.c.l.b16 %v645
        %v682 = vunpack.c.l.b16 %v646
        %v683 = vunpack.c.l.b16 %v647
        %v684 = vunpack.c.l.b16 %v648
        %v685 = vunpack.c.l.b16 %v649
        %v686 = vunpack.c.l.b16 %v650
        %v687 = vunpack.c.l.b16 %v651
        %v688 = vunpack.c.l.b16 %v652
        %v689 = vunpack.c.l.b16 %v653
        %v690 = vunpack.c.l.b16 %v654
        %v691 = vunpack.c.l.b16 %v655
        %v692 = vunpack.c.l.b16 %v656
        %v693 = vunpack.c.l.b16 %v657
        %v694 = vunpack.c.l.b16 %v658
        %v695 = vunpack.c.l.b16 %v659
        %v696 = vpack.c.b16 %v681, %v680
        %v697 = vpack.c.b16 %v683, %v682
        %v698 = vpack.c.b16 %v685, %v684
        %v699 = vpack.c.b16 %v687, %v686
        %v700 = vpack.c.b16 %v689, %v688
        %v701 = vpack.c.b16 %v691, %v690
        %v702 = vpack.c.b16 %v693, %v692
        %v703 = vpack.c.b16 %v695, %v694
        %712 = vmatpush.bf16.msra.mxu0 %v703
        %713 = vmatpush.bf16.msra.mxu0 %v702
        %714 = vmatpush.bf16.msra.mxu0 %v701
        %715 = vmatpush.bf16.msra.mxu0 %v700
        %716 = vmatpush.bf16.msra.mxu0 %v699
        %717 = vmatpush.bf16.msra.mxu0 %v698
        %718 = vmatpush.bf16.msra.mxu0 %v697
        %719 = vmatpush.bf16.msra.mxu0 %v696
        %720 = vmatmul.bf16.gmra.mxu0 %v643
        %v721 = vpop.f32.mrf.mxu0
        %v722 = vadd.f32 %v662, %v721
        %v723 = vpop.f32.mrf.mxu0
        %724 = vdwg.mxu0
        %v725 = vmax.f32 %v722, 0.0
        %726 = vst [vmem:[%s552] sm:$0xff] %v725
        %v727 = vpack.c.bf16 %v725, %v725
        %v728 = vld [vmem:[#allocation6] sm:$0xf]
        %v729 = vld [vmem:[#allocation6 + $0x4] sm:$0xf]
        %v730 = vld [vmem:[#allocation6 + $0x8] sm:$0xf]
        %v731 = vld [vmem:[#allocation6 + $0xc] sm:$0xf]
        %v732 = vld [vmem:[#allocation6 + $0x10] sm:$0xf]
        %v733 = vld [vmem:[#allocation6 + $0x14] sm:$0xf]
        %v734 = vld [vmem:[#allocation6 + $0x18] sm:$0xf]
        %v735 = vld [vmem:[#allocation6 + $0x1c] sm:$0xf]
        %v736 = vld [vmem:[#allocation6 + $0x20] sm:$0xf]
        %v737 = vld [vmem:[#allocation6 + $0x24] sm:$0xf]
        %v738 = vld [vmem:[#allocation6 + $0x28] sm:$0xf]
        %v739 = vld [vmem:[#allocation6 + $0x2c] sm:$0xf]
        %v740 = vld [vmem:[#allocation6 + $0x30] sm:$0xf]
        %v741 = vld [vmem:[#allocation6 + $0x34] sm:$0xf]
        %v742 = vld [vmem:[#allocation6 + $0x38] sm:$0xf]
        %v743 = vld [vmem:[#allocation6 + $0x3c] sm:$0xf]
        %v744 = vld [vmem:[%s542] sm:$0x1]
        %v746 = vperm.slane %v744, 0
        %v764 = vunpack.c.l.b16 %v728
        %v765 = vunpack.c.l.b16 %v729
        %v766 = vunpack.c.l.b16 %v730
        %v767 = vunpack.c.l.b16 %v731
        %v768 = vunpack.c.l.b16 %v732
        %v769 = vunpack.c.l.b16 %v733
        %v770 = vunpack.c.l.b16 %v734
        %v771 = vunpack.c.l.b16 %v735
        %v772 = vunpack.c.l.b16 %v736
        %v773 = vunpack.c.l.b16 %v737
        %v774 = vunpack.c.l.b16 %v738
        %v775 = vunpack.c.l.b16 %v739
        %v776 = vunpack.c.l.b16 %v740
        %v777 = vunpack.c.l.b16 %v741
        %v778 = vunpack.c.l.b16 %v742
        %v779 = vunpack.c.l.b16 %v743
        %v780 = vpack.c.b16 %v765, %v764
        %v781 = vpack.c.b16 %v767, %v766
        %v782 = vpack.c.b16 %v769, %v768
        %v783 = vpack.c.b16 %v771, %v770
        %v784 = vpack.c.b16 %v773, %v772
        %v785 = vpack.c.b16 %v775, %v774
        %v786 = vpack.c.b16 %v777, %v776
        %v787 = vpack.c.b16 %v779, %v778
        %796 = vmatpush.bf16.msra.mxu0 %v787
        %797 = vmatpush.bf16.msra.mxu0 %v786
        %798 = vmatpush.bf16.msra.mxu0 %v785
        %799 = vmatpush.bf16.msra.mxu0 %v784
        %800 = vmatpush.bf16.msra.mxu0 %v783
        %801 = vmatpush.bf16.msra.mxu0 %v782
        %802 = vmatpush.bf16.msra.mxu0 %v781
        %803 = vmatpush.bf16.msra.mxu0 %v780
        %804 = vmatmul.bf16.gmra.mxu0 %v727
        %v805 = vpop.f32.mrf.mxu0
        %v806 = vadd.f32 %v746, %v805
        %v807 = vpop.f32.mrf.mxu0
        %808 = vdwg.mxu0
        %v809 = vmax.f32 %v806, 0.0
        %v810 = vpack.c.bf16 %v809, %v809
        %v811 = vld [vmem:[#allocation7] sm:$0xf]
        %v812 = vld [vmem:[#allocation7 + $0x4] sm:$0xf]
        %v813 = vld [vmem:[#allocation7 + $0x8] sm:$0xf]
        %v814 = vld [vmem:[#allocation7 + $0xc] sm:$0xf]
        %v815 = vld [vmem:[#allocation7 + $0x10] sm:$0xf]
        %v816 = vld [vmem:[#allocation7 + $0x14] sm:$0xf]
        %v817 = vld [vmem:[#allocation7 + $0x18] sm:$0xf]
        %v818 = vld [vmem:[#allocation7 + $0x1c] sm:$0xf]
        %v819 = vld [vmem:[#allocation7 + $0x20] sm:$0xf]
        %v820 = vld [vmem:[#allocation7 + $0x24] sm:$0xf]
        %v821 = vld [vmem:[#allocation7 + $0x28] sm:$0xf]
        %v822 = vld [vmem:[#allocation7 + $0x2c] sm:$0xf]
        %v823 = vld [vmem:[#allocation7 + $0x30] sm:$0xf]
        %v824 = vld [vmem:[#allocation7 + $0x34] sm:$0xf]
        %v825 = vld [vmem:[#allocation7 + $0x38] sm:$0xf]
        %v826 = vld [vmem:[#allocation7 + $0x3c] sm:$0xf]
        %v827 = vld [vmem:[%s545] sm:$0x1]
        %v829 = vperm.slane %v827, 0
        %v847 = vunpack.c.l.b16 %v811
        %v848 = vunpack.c.l.b16 %v812
        %v849 = vunpack.c.l.b16 %v813
        %v850 = vunpack.c.l.b16 %v814
        %v851 = vunpack.c.l.b16 %v815
        %v852 = vunpack.c.l.b16 %v816
        %v853 = vunpack.c.l.b16 %v817
        %v854 = vunpack.c.l.b16 %v818
        %v855 = vunpack.c.l.b16 %v819
        %v856 = vunpack.c.l.b16 %v820
        %v857 = vunpack.c.l.b16 %v821
        %v858 = vunpack.c.l.b16 %v822
        %v859 = vunpack.c.l.b16 %v823
        %v860 = vunpack.c.l.b16 %v824
        %v861 = vunpack.c.l.b16 %v825
        %v862 = vunpack.c.l.b16 %v826
        %v863 = vpack.c.b16 %v848, %v847
        %v864 = vpack.c.b16 %v850, %v849
        %v865 = vpack.c.b16 %v852, %v851
        %v866 = vpack.c.b16 %v854, %v853
        %v867 = vpack.c.b16 %v856, %v855
        %v868 = vpack.c.b16 %v858, %v857
        %v869 = vpack.c.b16 %v860, %v859
        %v870 = vpack.c.b16 %v862, %v861
        %879 = vmatpush.bf16.msra.mxu0 %v870
        %880 = vmatpush.bf16.msra.mxu0 %v869
        %881 = vmatpush.bf16.msra.mxu0 %v868
        %882 = vmatpush.bf16.msra.mxu0 %v867
        %883 = vmatpush.bf16.msra.mxu0 %v866
        %884 = vmatpush.bf16.msra.mxu0 %v865
        %885 = vmatpush.bf16.msra.mxu0 %v864
        %886 = vmatpush.bf16.msra.mxu0 %v863
        %887 = vmatmul.bf16.gmra.mxu0 %v810
        %v888 = vpop.f32.mrf.mxu0
        %v889 = vadd.f32 %v829, %v888
        %v890 = vpop.f32.mrf.mxu0
        %891 = vdwg.mxu0
        %v892 = vmax.f32 %v889, 0.0
        %893 = vst [vmem:[%s559] sm:$0xff] %v892
        %p894 = scmp.lt.s32.totalorder %s29, 2
        %s895 = scalar_select %p894, %s29, 2
        %p896 = scmp.lt.s32.totalorder %s30, 0
        %s897 = scalar_select %p896, %s30, 0
        %s898 = sadd.s32 %s897, %s895
        %s899 = smul.addr %s898, 8
        %s900 = scalar_lea.vmem %s9, %s899
        %p901 = scmp.lt.s32.totalorder %s29, 2
        %s902 = scalar_select %p901, %s29, 2
        %p903 = scmp.lt.s32.totalorder %s30, 0
        %s904 = scalar_select %p903, %s30, 0
        %s905 = sadd.s32 %s904, %s902
        %s906 = smul.addr %s905, 8
        %s907 = scalar_lea.vmem %s10, %s906
        // Predicated region
        $region73: #{multi_view_contrastive_forward.1} parent=55 // pred_check
          %p908 = pneg %p293
        $region74: #{multi_view_contrastive_forward.1} parent=55 // pred_check_branch
          %910 = sbr.rel (%p908) target = $region76
        $region75: #{multi_view_contrastive_forward.1} parent=55 // pred_region
          _
        $region76: #{multi_view_contrastive_forward.1} parent=55 // pred_fallthru
          _
        // Predicated region
        $region77: #{multi_view_contrastive_forward.1} parent=55 // pred_check
          %p911 = pneg %p321
        $region78: #{multi_view_contrastive_forward.1} parent=55 // pred_check_branch
          %913 = sbr.rel (%p911) target = $region80
        $region79: #{multi_view_contrastive_forward.1} parent=55 // pred_region
          _
        $region80: #{multi_view_contrastive_forward.1} parent=55 // pred_fallthru
          _
      $region56: #{multi_view_contrastive_forward.1} parent=5 // pred_fallthru
        _
      %p914 = scmp.le.s32.totalorder 2, %s20
      // Predicated region
      $region81: #{multi_view_contrastive_forward.1} parent=5 // pred_check
        %p915 = pneg %p914
      $region82: #{multi_view_contrastive_forward.1} parent=5 // pred_check_branch
        %917 = sbr.rel (%p915) target = $region84
      $region83: #{multi_view_contrastive_forward.1} parent=5 // pred_region
        %s918 = ssub.s32 %s20, 2
        // Predicated region
        $region85: #{multi_view_contrastive_forward.1} parent=83 // pred_check
          %p919 = pneg %p299
        $region86: #{multi_view_contrastive_forward.1} parent=83 // pred_check_branch
          %921 = sbr.rel (%p919) target = $region88
        $region87: #{multi_view_contrastive_forward.1} parent=83 // pred_region
          %p922 = scmp.lt.s32.totalorder %s31, 2
          %s923 = scalar_select %p922, %s31, 2
          %p924 = scmp.lt.s32.totalorder %s32, 0
          %s925 = scalar_select %p924, %s32, 0
          %s926 = sadd.s32 %s925, %s923
          %s927 = smul.addr %s926, 8
          %s928 = scalar_lea.vmem %s9, %s927
        $region88: #{multi_view_contrastive_forward.1} parent=83 // pred_fallthru
          _
        // Predicated region
        $region89: #{multi_view_contrastive_forward.1} parent=83 // pred_check
          %p929 = pneg %p327
        $region90: #{multi_view_contrastive_forward.1} parent=83 // pred_check_branch
          %931 = sbr.rel (%p929) target = $region92
        $region91: #{multi_view_contrastive_forward.1} parent=83 // pred_region
          %p932 = scmp.lt.s32.totalorder %s31, 2
          %s933 = scalar_select %p932, %s31, 2
          %p934 = scmp.lt.s32.totalorder %s32, 0
          %s935 = scalar_select %p934, %s32, 0
          %s936 = sadd.s32 %s935, %s933
          %s937 = smul.addr %s936, 8
          %s938 = scalar_lea.vmem %s10, %s937
        $region92: #{multi_view_contrastive_forward.1} parent=83 // pred_fallthru
          _
      $region84: #{multi_view_contrastive_forward.1} parent=5 // pred_fallthru
        _
    $region6: #{multi_view_contrastive_forward.1} parent=1 // loop_footer
      %s24 = sadd.s32 1, %s20
    $region7: #{multi_view_contrastive_forward.1} parent=1 // loop_footer_branch
      %19 = sbr.rel target = $region3
    $region8: #{multi_view_contrastive_forward.1} parent=1 // loop_exit
      _
    %939 = vsyncpa [#allocation3], 1
    %s940 = scalar_lea.sflag [#allocation3], 1
    %941 = vsyncpa %s940, 1
    %942 = vsyncpa [#allocation5], 1
    %943 = vsyncpa [#allocation8], 1

</llo_original>
